<compile_context>
chip_gen: v5e
topology: v5e:2x2
jax: 0.10.0
libtpu: 0.0.40
codegen_flags: <defaults>
</compile_context>

<pallas_src>
import jax
import jax.numpy as jnp
from jax import lax
from jax.experimental import pallas as pl
from jax.experimental.pallas import tpu as pltpu

LANE = 128  # TPU vreg lane width


def mlp_kernel(x_ref, w1_ref, b1_ref, w2_ref, b2_ref, w3_ref, b3_ref, oT_ref):
    """One batch tile per grid step; all three layers fused.

    x_ref:  (bn, F)   native PyTorch layout (batch on sublanes)
    w*_ref: (out, in) PyTorch layout (resident across the grid)
    b*_ref: (out, 1)  f32 columns, broadcast over lanes
    oT_ref: (1, bn)   lane-dense transposed output tile
    """
    x = x_ref[...]
    # (H1, F) contracted with (bn, F) on the F axis -> (H1, bn): batch moves
    # onto the lane axis without any wrapper-side transpose (XLU is idle here).
    h1 = lax.dot_general(
        w1_ref[...], x,
        dimension_numbers=(((1,), (1,)), ((), ())),
        preferred_element_type=jnp.float32) + b1_ref[...]
    h1 = jnp.maximum(h1, 0.0)
    h2 = jnp.dot(w2_ref[...], h1.astype(w2_ref.dtype),
                 preferred_element_type=jnp.float32) + b2_ref[...]
    h2 = jnp.maximum(h2, 0.0)
    y = jnp.dot(w3_ref[...], h2.astype(w3_ref.dtype),
                preferred_element_type=jnp.float32) + b3_ref[...]
    oT_ref[...] = y.astype(oT_ref.dtype)


def simple_nn_forward(x, params, *, bn=8192):
    """x: (B, F), any float dtype (compute dtype follows x; accumulation f32).
    params: PyTorch-layout weights (out, in) and biases (out, 1).
    bn: batch-lane tile; clamped to a multiple of 128, to the 128-padded batch,
        and to at most half the padded batch (so v7x's 2 TCs both get work)."""
    B, F = x.shape
    w1, b1, w2, b2, w3, b3 = (params[k] for k in ("w1", "b1", "w2", "b2", "w3", "b3"))
    H1, H2, OUT = w1.shape[0], w2.shape[0], w3.shape[0]

    # --- tile-size selection (all static Python ints) ---
    Bp = pl.cdiv(B, LANE) * LANE                 # 128-padded output lane extent
    bn = max(LANE, min(bn, Bp))
    bn = (bn // LANE) * LANE                     # multiple of 128
    half = (Bp // 2 // LANE) * LANE              # v7x: prefer >= 2 grid steps
    if half >= LANE:
        bn = min(bn, half)
    grid_n = pl.cdiv(Bp, bn)                     # == cdiv(B, bn) since bn % 128 == 0

    # Weights follow x's dtype (tiny arrays; no HBM pass over x). Biases f32.
    cdt = x.dtype
    w1c, w2c, w3c = (w.astype(cdt) for w in (w1, w2, w3))
    b1f, b2f, b3f = (b.astype(jnp.float32) for b in (b1, b2, b3))

    itemsize = jnp.dtype(cdt).itemsize
    flops = 2 * B * (F * H1 + H1 * H2 + H2 * OUT)
    bytes_accessed = (B * F * itemsize + B * OUT * 4
                      + (H1 * F + H2 * H1 + OUT * H2) * itemsize
                      + (H1 + H2 + OUT) * 4)
    cost = pl.CostEstimate(flops=flops, transcendentals=0,
                           bytes_accessed=bytes_accessed)

    yT = pl.pallas_call(
        mlp_kernel,
        out_shape=jax.ShapeDtypeStruct((OUT, Bp), jnp.float32),
        grid_spec=pltpu.PrefetchScalarGridSpec(
            num_scalar_prefetch=0,
            grid=(grid_n,),
            in_specs=[
                pl.BlockSpec((bn, F), lambda i: (i, 0)),    # x tile, native layout
                pl.BlockSpec((H1, F), lambda i: (0, 0)),    # W1 (resident)
                pl.BlockSpec((H1, 1), lambda i: (0, 0)),    # b1
                pl.BlockSpec((H2, H1), lambda i: (0, 0)),   # W2
                pl.BlockSpec((H2, 1), lambda i: (0, 0)),    # b2
                pl.BlockSpec((OUT, H2), lambda i: (0, 0)),  # W3
                pl.BlockSpec((OUT, 1), lambda i: (0, 0)),   # b3
            ],
            out_specs=pl.BlockSpec((OUT, bn), lambda i: (0, i)),  # lane-dense (1, bn)
        ),
        compiler_params=pltpu.CompilerParams(
            dimension_semantics=("parallel",),
        ),
        cost_estimate=cost,
    )(x, w1c, b1f, w2c, b2f, w3c, b3f)

    # Back to PyTorch output layout (B, 1); padded/garbage columns dropped.
    return yT[:, :B].T


def init_params(key, in_features):
    """PyTorch nn.Linear default init: U(-1/sqrt(fan_in), +1/sqrt(fan_in)).
    Weights stored in PyTorch layout (out, in); biases as (out, 1) columns."""
    sizes = [(in_features, 24), (24, 12), (12, 1)]
    params = {}
    keys = jax.random.split(key, 2 * len(sizes))
    for idx, (fan_in, fan_out) in enumerate(sizes):
        bound = 1.0 / jnp.sqrt(jnp.float32(fan_in))
        w = jax.random.uniform(keys[2 * idx], (fan_out, fan_in),
                               minval=-bound, maxval=bound, dtype=jnp.float32)
        b = jax.random.uniform(keys[2 * idx + 1], (fan_out, 1),
                               minval=-bound, maxval=bound, dtype=jnp.float32)
        params[f"w{idx + 1}"] = w
        params[f"b{idx + 1}"] = b
    return params


def reference_forward(x, params):
    x = x.astype(jnp.float32)
    h1 = jnp.maximum(x @ params["w1"].T + params["b1"].T, 0.0)
    h2 = jnp.maximum(h1 @ params["w2"].T + params["b2"].T, 0.0)
    return h2 @ params["w3"].T + params["b3"].T


if __name__ == "__main__":
    key = jax.random.PRNGKey(0)
    k_x, k_p, k_x2 = jax.random.split(key, 3)

    B, F = 32, 16  # X_train.shape[1] taken as 16 (standard-scaled features)
    x = jax.random.normal(k_x, (B, F), dtype=jnp.float32)
    params = init_params(k_p, F)
    y_ref = reference_forward(x, params)

    # f32 path, tiny batch -> single grid step (tail of the 128-lane block is
    # garbage-read / masked-write, then sliced off).
    y = jax.block_until_ready(simple_nn_forward(x, params))
    assert y.shape == (B, 1)
    assert jnp.allclose(y, y_ref, atol=1e-5, rtol=1e-5), "f32 mismatch vs reference"

    # Ragged batch with a small explicit tile -> multi-step grid, no wrapper pad.
    B2 = 300
    x2 = jax.random.normal(k_x2, (B2, F), dtype=jnp.float32)
    y2 = jax.block_until_ready(simple_nn_forward(x2, params, bn=128))
    y2_ref = reference_forward(x2, params)
    assert y2.shape == (B2, 1)
    assert jnp.allclose(y2, y2_ref, atol=1e-5, rtol=1e-5), "tail-tile mismatch vs reference"

    # bf16 path: only meaningful when x *already arrives* in bf16 (no wrapper
    # cast pass); accumulation stays f32 in-kernel.
    x_bf16 = x.astype(jnp.bfloat16)
    y_bf16 = jax.block_until_ready(simple_nn_forward(x_bf16, params))
    assert y_bf16.shape == (B, 1)
    assert jnp.allclose(y_bf16, y_ref, atol=5e-2, rtol=5e-2), "bf16 mismatch vs reference"

    print("KERNEL_OK")
</pallas_src>

<mosaic_0001>
module attributes {stable_mosaic.version = 11 : i64} {
  func.func @mlp_kernel(%arg0: i32, %arg1: memref<128x16xf32, #tpu.memory_space<vmem>>, %arg2: memref<24x16xf32, #tpu.memory_space<vmem>>, %arg3: memref<24x1xf32, #tpu.memory_space<vmem>>, %arg4: memref<12x24xf32, #tpu.memory_space<vmem>>, %arg5: memref<12x1xf32, #tpu.memory_space<vmem>>, %arg6: memref<1x12xf32, #tpu.memory_space<vmem>>, %arg7: memref<1x1xf32, #tpu.memory_space<vmem>>, %arg8: memref<1x128xf32, #tpu.memory_space<vmem>>) attributes {dimension_semantics = [#tpu.dimension_semantics<parallel>], iteration_bounds = array<i64: 1>, scalar_prefetch = 0 : i64, scratch_operands = 0 : i64, tpu.core_type = #tpu.core_type<tc>, window_params = [{transform_indices = @transform_0, window_bounds = array<i64: 128, 16>}, {pipeline_mode = #tpu.pipeline_mode<synchronous>, transform_indices = @transform_1, window_bounds = array<i64: 24, 16>}, {pipeline_mode = #tpu.pipeline_mode<synchronous>, transform_indices = @transform_2, window_bounds = array<i64: 24, 1>}, {pipeline_mode = #tpu.pipeline_mode<synchronous>, transform_indices = @transform_3, window_bounds = array<i64: 12, 24>}, {pipeline_mode = #tpu.pipeline_mode<synchronous>, transform_indices = @transform_4, window_bounds = array<i64: 12, 1>}, {pipeline_mode = #tpu.pipeline_mode<synchronous>, transform_indices = @transform_5, window_bounds = array<i64: 1, 12>}, {pipeline_mode = #tpu.pipeline_mode<synchronous>, transform_indices = @transform_6, window_bounds = array<i64: 1, 1>}, {transform_indices = @transform_7, window_bounds = array<i64: 1, 128>}]} {
    %c0 = arith.constant 0 : index
    %c0_0 = arith.constant 0 : index
    %0 = vector.load %arg1[%c0, %c0_0] : memref<128x16xf32, #tpu.memory_space<vmem>>, vector<128x16xf32>
    %c0_1 = arith.constant 0 : index
    %c0_2 = arith.constant 0 : index
    %1 = vector.load %arg2[%c0_1, %c0_2] : memref<24x16xf32, #tpu.memory_space<vmem>>, vector<24x16xf32>
    %cst = arith.constant dense<0.000000e+00> : vector<24x128xf32>
    %2 = tpu.matmul %1, %0, %cst {dimension_numbers = #tpu.dot_dimension_numbers<[1], [1], [0], [0], [0, 0, 1, 0], [], []>} : vector<24x16xf32>, vector<128x16xf32>, vector<24x128xf32> -> vector<24x128xf32>
    %c0_3 = arith.constant 0 : index
    %c0_4 = arith.constant 0 : index
    %3 = vector.load %arg3[%c0_3, %c0_4] : memref<24x1xf32, #tpu.memory_space<vmem>>, vector<24x1xf32>
    %4 = vector.broadcast %3 : vector<24x1xf32> to vector<24x128xf32>
    %5 = arith.addf %2, %4 : vector<24x128xf32>
    %cst_5 = arith.constant 0.000000e+00 : f32
    %6 = vector.broadcast %cst_5 : f32 to vector<24x128xf32>
    %7 = arith.maximumf %5, %6 : vector<24x128xf32>
    %c0_6 = arith.constant 0 : index
    %c0_7 = arith.constant 0 : index
    %8 = vector.load %arg4[%c0_6, %c0_7] : memref<12x24xf32, #tpu.memory_space<vmem>>, vector<12x24xf32>
    %cst_8 = arith.constant dense<0.000000e+00> : vector<12x128xf32>
    %9 = tpu.matmul %8, %7, %cst_8 {dimension_numbers = #tpu.dot_dimension_numbers<[1], [0], [0], [1], [0, 0, 1, 1], [], []>} : vector<12x24xf32>, vector<24x128xf32>, vector<12x128xf32> -> vector<12x128xf32>
    %c0_9 = arith.constant 0 : index
    %c0_10 = arith.constant 0 : index
    %10 = vector.load %arg5[%c0_9, %c0_10] : memref<12x1xf32, #tpu.memory_space<vmem>>, vector<12x1xf32>
    %11 = vector.broadcast %10 : vector<12x1xf32> to vector<12x128xf32>
    %12 = arith.addf %9, %11 : vector<12x128xf32>
    %cst_11 = arith.constant 0.000000e+00 : f32
    %13 = vector.broadcast %cst_11 : f32 to vector<12x128xf32>
    %14 = arith.maximumf %12, %13 : vector<12x128xf32>
    %c0_12 = arith.constant 0 : index
    %c0_13 = arith.constant 0 : index
    %15 = vector.load %arg6[%c0_12, %c0_13] : memref<1x12xf32, #tpu.memory_space<vmem>>, vector<1x12xf32>
    %cst_14 = arith.constant dense<0.000000e+00> : vector<1x128xf32>
    %16 = tpu.matmul %15, %14, %cst_14 {dimension_numbers = #tpu.dot_dimension_numbers<[1], [0], [0], [1], [0, 0, 1, 1], [], []>} : vector<1x12xf32>, vector<12x128xf32>, vector<1x128xf32> -> vector<1x128xf32>
    %c0_15 = arith.constant 0 : index
    %c0_16 = arith.constant 0 : index
    %17 = vector.load %arg7[%c0_15, %c0_16] : memref<1x1xf32, #tpu.memory_space<vmem>>, vector<1x1xf32>
    %18 = vector.broadcast %17 : vector<1x1xf32> to vector<1x128xf32>
    %19 = arith.addf %16, %18 : vector<1x128xf32>
    %c0_17 = arith.constant 0 : index
    %c0_18 = arith.constant 0 : index
    %20 = vector.load %arg8[%c0_17, %c0_18] : memref<1x128xf32, #tpu.memory_space<vmem>>, vector<1x128xf32>
    tpu.vector_store %arg8[%c0_17, %c0_18], %19 {strides = array<i32>} : memref<1x128xf32, #tpu.memory_space<vmem>>, vector<1x128xf32>,
    return
  }
  func.func @transform_0(%arg0: i32) -> (i32, i32) {
    %c0_i32 = arith.constant 0 : i32
    %c0_i32_0 = arith.constant 0 : i32
    return %arg0, %c0_i32 : i32, i32
  }
  func.func @transform_1(%arg0: i32) -> (i32, i32) {
    %c0_i32 = arith.constant 0 : i32
    %c0_i32_0 = arith.constant 0 : i32
    %c0_i32_1 = arith.constant 0 : i32
    return %c0_i32, %c0_i32_0 : i32, i32
  }
  func.func @transform_2(%arg0: i32) -> (i32, i32) {
    %c0_i32 = arith.constant 0 : i32
    %c0_i32_0 = arith.constant 0 : i32
    %c0_i32_1 = arith.constant 0 : i32
    return %c0_i32, %c0_i32_0 : i32, i32
  }
  func.func @transform_3(%arg0: i32) -> (i32, i32) {
    %c0_i32 = arith.constant 0 : i32
    %c0_i32_0 = arith.constant 0 : i32
    %c0_i32_1 = arith.constant 0 : i32
    return %c0_i32, %c0_i32_0 : i32, i32
  }
  func.func @transform_4(%arg0: i32) -> (i32, i32) {
    %c0_i32 = arith.constant 0 : i32
    %c0_i32_0 = arith.constant 0 : i32
    %c0_i32_1 = arith.constant 0 : i32
    return %c0_i32, %c0_i32_0 : i32, i32
  }
  func.func @transform_5(%arg0: i32) -> (i32, i32) {
    %c0_i32 = arith.constant 0 : i32
    %c0_i32_0 = arith.constant 0 : i32
    %c0_i32_1 = arith.constant 0 : i32
    return %c0_i32, %c0_i32_0 : i32, i32
  }
  func.func @transform_6(%arg0: i32) -> (i32, i32) {
    %c0_i32 = arith.constant 0 : i32
    %c0_i32_0 = arith.constant 0 : i32
    %c0_i32_1 = arith.constant 0 : i32
    return %c0_i32, %c0_i32_0 : i32, i32
  }
  func.func @transform_7(%arg0: i32) -> (i32, i32) {
    %c0_i32 = arith.constant 0 : i32
    %c0_i32_0 = arith.constant 0 : i32
    return %c0_i32, %arg0 : i32, i32
  }
}

</mosaic_0001>

<llo_original>
// kernel: tpu_custom_call.1
$region0: #{tpu_custom_call.1}
  #allocation0 [shape = 'u32[]', space=smem, size = 0x4, offset = 0x4, fixed_abs, tag = 'smem constant byte address 0x4 - core index']
  #allocation1 [shape = 'u32[72,128]{1,0:T(1,128)}', space=vmem, size = 0x9000, scoped, tag = 'internal scratch']
  #allocation2 [shape = 'f32[1,1]{1,0:T(1,128)S(1)}', space=vmem, size = 0x200, scoped, tag = 'scoped memory for tpu_custom_call.1']
  %s0 = inlined_call_operand.vmem [shape: f32[32,16], index: 0, kind: input, shape index: {}]
  %s1 = inlined_call_operand.vmem [shape: f32[24,16], index: 1, kind: input, shape index: {}]
  %s2 = inlined_call_operand.vmem [shape: f32[24,1], index: 2, kind: input, shape index: {}]
  %s3 = inlined_call_operand.vmem [shape: f32[12,24], index: 3, kind: input, shape index: {}]
  %s4 = inlined_call_operand.vmem [shape: f32[12,1], index: 4, kind: input, shape index: {}]
  %s5 = inlined_call_operand.vmem [shape: f32[1,12], index: 5, kind: input, shape index: {}]
  %s6 = inlined_call_operand.<no memory space> [shape: f32[1,1], index: 6, kind: input, shape index: {}]
  %s7 = inlined_call_operand.hbm [shape: f32[1,128], index: 7, kind: output, shape index: {}]
  %s8 = sld [smem:[#allocation0]]
  $region38: #{tpu_custom_call.1} parent=0
    _
  %s10 = ssub.s32 1, %s8
  %s11 = scalar_select 0, %s10, %s8
  %v12 = vstv %s6
  %13 = vst [vmem:[#allocation2] sm:$0x1] %v12
  $region1: #{tpu_custom_call.1} parent=0
    #allocation3 [shape = 'u8[512]{0}', space=vmem, size = 0x400, scoped, tag = 'output window, operand 0, single buffered']
    #allocation4 [shape = 's32[1]{0}', space=sflag, size = 0x4, scoped, tag = 'scoped memory for tpu_custom_call.1']
    %14 = vsyncpa [#allocation4], 0
    // Predicated region
    $region2: #{tpu_custom_call.1} parent=1 // pred_check
      _
    $region3: #{tpu_custom_call.1} parent=1 // pred_check_branch
      %16 = sbr.rel (0) target = $region5
    $region4: #{tpu_custom_call.1} parent=1 // pred_region
      _
    $region5: #{tpu_custom_call.1} parent=1 // pred_fallthru
      _
    // Predicated region
    $region6: #{tpu_custom_call.1} parent=1 // pred_check
      _
    $region7: #{tpu_custom_call.1} parent=1 // pred_check_branch
      %18 = sbr.rel (0) target = $region9
    $region8: #{tpu_custom_call.1} parent=1 // pred_region
      _
    $region9: #{tpu_custom_call.1} parent=1 // pred_fallthru
      _
    // Predicated region
    $region10: #{tpu_custom_call.1} parent=1 // pred_check
      _
    $region11: #{tpu_custom_call.1} parent=1 // pred_check_branch
      %20 = sbr.rel (0) target = $region13
    $region12: #{tpu_custom_call.1} parent=1 // pred_region
      _
    $region13: #{tpu_custom_call.1} parent=1 // pred_fallthru
      _
    // Predicated region
    $region14: #{tpu_custom_call.1} parent=1 // pred_check
      _
    $region15: #{tpu_custom_call.1} parent=1 // pred_check_branch
      %22 = sbr.rel (0) target = $region17
    $region16: #{tpu_custom_call.1} parent=1 // pred_region
      _
    $region17: #{tpu_custom_call.1} parent=1 // pred_fallthru
      _
    // Predicated region
    $region18: #{tpu_custom_call.1} parent=1 // pred_check
      _
    $region19: #{tpu_custom_call.1} parent=1 // pred_check_branch
      %24 = sbr.rel (0) target = $region21
    $region20: #{tpu_custom_call.1} parent=1 // pred_region
      _
    $region21: #{tpu_custom_call.1} parent=1 // pred_fallthru
      _
    // Predicated region
    $region22: #{tpu_custom_call.1} parent=1 // pred_check
      _
    $region23: #{tpu_custom_call.1} parent=1 // pred_check_branch
      %26 = sbr.rel (0) target = $region25
    $region24: #{tpu_custom_call.1} parent=1 // pred_region
      _
    $region25: #{tpu_custom_call.1} parent=1 // pred_fallthru
      _
    // Predicated region
    $region26: #{tpu_custom_call.1} parent=1 // pred_check
      _
    $region27: #{tpu_custom_call.1} parent=1 // pred_check_branch
      %28 = sbr.rel (0) target = $region29
    $region28: #{tpu_custom_call.1} parent=1 // pred_region
      _
    $region29: #{tpu_custom_call.1} parent=1 // pred_fallthru
      _
    %v29 = vld [vmem:[%s0] sm:$0xff]
    %v30 = vld [vmem:[%s0 + $0x8] sm:$0xff]
    %v31 = vld [vmem:[%s0 + $0x10] sm:$0xff]
    %v32 = vld [vmem:[%s0 + $0x18] sm:$0xff]
    %v33 = vld [vmem:[%s0 + $0x20] sm:$0xff]
    %v34 = vld [vmem:[%s0 + $0x28] sm:$0xff]
    %v35 = vld [vmem:[%s0 + $0x30] sm:$0xff]
    %v36 = vld [vmem:[%s0 + $0x38] sm:$0xff]
    %v37 = vld [vmem:[%s0 + $0x40] sm:$0xff]
    %v38 = vld [vmem:[%s0 + $0x48] sm:$0xff]
    %v39 = vld [vmem:[%s0 + $0x50] sm:$0xff]
    %v40 = vld [vmem:[%s0 + $0x58] sm:$0xff]
    %v41 = vld [vmem:[%s0 + $0x60] sm:$0xff]
    %v42 = vld [vmem:[%s0 + $0x68] sm:$0xff]
    %v43 = vld [vmem:[%s0 + $0x70] sm:$0xff]
    %v44 = vld [vmem:[%s0 + $0x78] sm:$0xff]
    %v45 = vld [vmem:[%s1] sm:$0xff]
    %v46 = vld [vmem:[%s1 + $0x8] sm:$0xff]
    %v47 = vld [vmem:[%s1 + $0x10] sm:$0xff]
    %v48 = vld [vmem:[%s2] sm:$0xff]
    %v49 = vld [vmem:[%s2 + $0x8] sm:$0xff]
    %v50 = vld [vmem:[%s2 + $0x10] sm:$0xff]
    %52 = vset.pattern.permute.xlu0 0
    %53 = vperm.xlu0 %52, %v48
    %v54 = vpop.permute.xlu0 %53
    %57 = vset.pattern.permute.xlu0 0
    %58 = vperm.xlu0 %57, %v49
    %v59 = vpop.permute.xlu0 %58
    %62 = vset.pattern.permute.xlu0 0
    %63 = vperm.xlu0 %62, %v50
    %v64 = vpop.permute.xlu0 %63
    %vm66 = vcmask 130048
    %v68 = vsel %vm66, %v45, 0
    %v71 = vsel %vm66, %v46, 0
    %v74 = vsel %vm66, %v47, 0
    %v77 = vsel %vm66, %v29, 0
    %v80 = vsel %vm66, %v30, 0
    %v83 = vsel %vm66, %v31, 0
    %v86 = vsel %vm66, %v32, 0
    %v89 = vsel %vm66, %v33, 0
    %v92 = vsel %vm66, %v34, 0
    %v95 = vsel %vm66, %v35, 0
    %v98 = vsel %vm66, %v36, 0
    %v101 = vsel %vm66, %v37, 0
    %v104 = vsel %vm66, %v38, 0
    %v107 = vsel %vm66, %v39, 0
    %v110 = vsel %vm66, %v40, 0
    %v113 = vsel %vm66, %v41, 0
    %v116 = vsel %vm66, %v42, 0
    %v119 = vsel %vm66, %v43, 0
    %v122 = vsel %vm66, %v44, 0
    %124 = vmatpush.xpose.msra.mxu0 %v122
    %125 = vmatpush.xpose.msra.mxu0 %v119
    %126 = vmatpush.xpose.msra.mxu0 %v116
    %127 = vmatpush.xpose.msra.mxu0 %v113
    %128 = vmatpush.xpose.msra.mxu0 %v110
    %129 = vmatpush.xpose.msra.mxu0 %v107
    %130 = vmatpush.xpose.msra.mxu0 %v104
    %131 = vmatpush.xpose.msra.mxu0 %v101
    %132 = vmatpush.xpose.msra.mxu0 %v98
    %133 = vmatpush.xpose.msra.mxu0 %v95
    %134 = vmatpush.xpose.msra.mxu0 %v92
    %135 = vmatpush.xpose.msra.mxu0 %v89
    %136 = vmatpush.xpose.msra.mxu0 %v86
    %137 = vmatpush.xpose.msra.mxu0 %v83
    %138 = vmatpush.xpose.msra.mxu0 %v80
    %139 = vmatpush.xpose.msra.mxu0 %v77
    %140 = vmatmul.f32.gmra.mxu0 %v68
    %v141 = vpop.f32.mrf.mxu0
    %v142 = vadd.f32 %v54, %v141
    %143 = vmatmul.f32.gmra.mxu0 %v71
    %v144 = vpop.f32.mrf.mxu0
    %v145 = vadd.f32 %v59, %v144
    %146 = vmatmul.f32.gmra.mxu0 %v74
    %v147 = vpop.f32.mrf.mxu0
    %v148 = vadd.f32 %v64, %v147
    %149 = vdwg.mxu0
    %v150 = vmax.f32 %v142, 0.0
    %v151 = vmax.f32 %v145, 0.0
    %v152 = vmax.f32 %v148, 0.0
    %v153 = vld [vmem:[%s3] sm:$0xff]
    %v154 = vld [vmem:[%s3 + $0x8] sm:$0xf]
    %v155 = vld [vmem:[%s4] sm:$0xff]
    %v156 = vld [vmem:[%s4 + $0x8] sm:$0xf]
    %158 = vset.pattern.permute.xlu0 0
    %159 = vperm.xlu0 %158, %v155
    %v160 = vpop.permute.xlu0 %159
    %163 = vset.pattern.permute.xlu0 0
    %164 = vperm.xlu0 %163, %v156
    %v165 = vpop.permute.xlu0 %164
    %vm167 = vcmask 195584
    %v169 = vsel %vm167, %v153, 0
    %v172 = vsel %vm167, %v154, 0
    %174 = vmatpush.msra.mxu0 0.0
    %175 = vmatpush.msra.mxu0 0.0
    %176 = vmatpush.msra.mxu0 0.0
    %177 = vmatpush.msra.mxu0 0.0
    %178 = vmatpush.msra.mxu0 0.0
    %179 = vmatpush.msra.mxu0 0.0
    %180 = vmatpush.msra.mxu0 0.0
    %181 = vmatpush.msra.mxu0 0.0
    %182 = vmatpush.msra.mxu0 0.0
    %183 = vmatpush.msra.mxu0 0.0
    %184 = vmatpush.msra.mxu0 0.0
    %185 = vmatpush.msra.mxu0 0.0
    %186 = vmatpush.msra.mxu0 0.0
    %187 = vmatpush.msra.mxu0 %v152
    %188 = vmatpush.msra.mxu0 %v151
    %189 = vmatpush.msra.mxu0 %v150
    %190 = vmatmul.f32.gmra.mxu0 %v169
    %v191 = vpop.f32.mrf.mxu0
    %v192 = vadd.f32 %v160, %v191
    %193 = vmatmul.f32.gmra.mxu0 %v172
    %v194 = vpop.f32.mrf.mxu0
    %v195 = vadd.f32 %v165, %v194
    %196 = vdwg.mxu0
    %v197 = vmax.f32 %v192, 0.0
    %v198 = vmax.f32 %v195, 0.0
    %v199 = vld [vmem:[%s5] sm:$0x1]
    %v200 = vld [vmem:[#allocation2] sm:$0x1]
    %202 = vset.pattern.permute.xlu0 0
    %203 = vperm.xlu0 %202, %v200
    %v204 = vpop.permute.xlu0 %203
    %v206 = vperm.slane %v204, 0
    %vm207 = vcmask 97280
    %v209 = vsel %vm207, %v199, 0
    %vm211 = vcmask 1043456
    %v213 = vsel %vm211, %v198, 0
    %215 = vmatpush.msra.mxu0 0.0
    %216 = vmatpush.msra.mxu0 0.0
    %217 = vmatpush.msra.mxu0 0.0
    %218 = vmatpush.msra.mxu0 0.0
    %219 = vmatpush.msra.mxu0 0.0
    %220 = vmatpush.msra.mxu0 0.0
    %221 = vmatpush.msra.mxu0 0.0
    %222 = vmatpush.msra.mxu0 0.0
    %223 = vmatpush.msra.mxu0 0.0
    %224 = vmatpush.msra.mxu0 0.0
    %225 = vmatpush.msra.mxu0 0.0
    %226 = vmatpush.msra.mxu0 0.0
    %227 = vmatpush.msra.mxu0 0.0
    %228 = vmatpush.msra.mxu0 0.0
    %229 = vmatpush.msra.mxu0 %v213
    %230 = vmatpush.msra.mxu0 %v197
    %231 = vmatmul.f32.gmra.mxu0 %v209
    %v232 = vpop.f32.mrf.mxu0
    %v233 = vadd.f32 %v206, %v232
    %234 = vdwg.mxu0
    %235 = vst [vmem:[#allocation3] sm:$0x1] %v233
    // Predicated region
    $region30: #{tpu_custom_call.1} parent=1 // pred_check
      _
    $region31: #{tpu_custom_call.1} parent=1 // pred_check_branch
      %237 = sbr.rel (0) target = $region33
    $region32: #{tpu_custom_call.1} parent=1 // pred_region
      %239 = vsyncadd [#allocation4], 0
      %s241 = sshll.u32 [#allocation3], 4
      %s242 = int_to_ptr.vmem [resolvable:$true] %s241
      %s243 = sshll.u32 %s7, 4
      %s244 = int_to_ptr.hbm [resolvable:$true] %s243
      %246 = dma.vmem_to_hbm [thread:$0]  %s242, 16, %s244, [#allocation4]
    $region33: #{tpu_custom_call.1} parent=1 // pred_fallthru
      _
    // Predicated region
    $region34: #{tpu_custom_call.1} parent=1 // pred_check
      _
    $region35: #{tpu_custom_call.1} parent=1 // pred_check_branch
      %248 = sbr.rel (0) target = $region37
    $region36: #{tpu_custom_call.1} parent=1 // pred_region
      %250 = dma.done [#allocation4], 16
    $region37: #{tpu_custom_call.1} parent=1 // pred_fallthru
      _
    %251 = vsyncpa [#allocation4], 1

</llo_original>
